<compile_context>
chip_gen: v7x
topology: tpu7x:2x2x1
jax: 0.10.0
libtpu: 0.0.40
codegen_flags: <defaults>
</compile_context>

<pallas_src>
import functools

import jax
import jax.numpy as jnp
from jax.experimental import pallas as pl
from jax.experimental.pallas import tpu as pltpu


_VMEM_BUDGET = 40 * 1024 * 1024   # conservative working-set budget (fits v7x 64 MiB)
_VMEM_LIMIT = 48 * 1024 * 1024    # scoped-VMEM limit handed to Mosaic


def _round_up(a: int, m: int) -> int:
    return ((a + m - 1) // m) * m


def _cdiv(a: int, b: int) -> int:
    return (a + b - 1) // b


def _sublane(dtype) -> int:
    # 8 for f32, 16 for bf16, 32 for int8/fp8 (sub-32-bit packs along sublanes).
    return max(8, 32 // jnp.dtype(dtype).itemsize)


# --------------------------------------------------------------------------
# Kernels
# --------------------------------------------------------------------------
def _linear_kernel_resident(x_ref, w_ref, b_ref, o_ref, *, compute_dtype):
    # x_ref: (tm, D)  w_ref: (D, C) resident  b_ref: (1, C) f32  o_ref: (tm, C)
    x = x_ref[...]
    if compute_dtype is not None:
        x = x.astype(compute_dtype)          # in-VMEM cast, hidden under DMA
    acc = jnp.dot(x, w_ref[...], preferred_element_type=jnp.float32)
    o_ref[...] = (acc + b_ref[...]).astype(o_ref.dtype)


def _linear_kernel_tiled(x_ref, w_ref, b_ref, o_ref, acc_ref, *, compute_dtype):
    # x_ref: (tm, tk)  w_ref: (tk, tn)  b_ref: (1, tn)  o_ref: (tm, tn)
    # acc_ref: (tm, tn) f32 scratch; grid = (M, N, K) with K innermost.
    k = pl.program_id(2)

    @pl.when(k == 0)
    def _():
        acc_ref[...] = jnp.zeros_like(acc_ref)

    x = x_ref[...]
    w = w_ref[...]
    if compute_dtype is not None:
        x = x.astype(compute_dtype)
        w = w.astype(compute_dtype)
    acc_ref[...] += jnp.dot(x, w, preferred_element_type=jnp.float32)

    @pl.when(k == pl.num_programs(2) - 1)
    def _():
        o_ref[...] = (acc_ref[...] + b_ref[...]).astype(o_ref.dtype)


# --------------------------------------------------------------------------
# Wrapper
# --------------------------------------------------------------------------
@functools.partial(
    jax.jit, static_argnames=("tm", "tn", "tk", "compute_dtype", "force_tiled")
)
def logistic_regression_forward(
    x, weight, bias, *, tm=512, tn=256, tk=512, compute_dtype=None,
    force_tiled=False,
):
    """Forward pass of LogisticRegression (nn.Linear): out = x @ W^T + b.

    x:      (B, D)
    weight: (C, D)   (PyTorch nn.Linear layout)
    bias:   (C,)
    returns (B, C) in x.dtype, computed with f32 accumulation.

    compute_dtype: optional MXU compute dtype (e.g. jnp.bfloat16); the cast is
    done on the VMEM tile inside the kernel, never as an extra HBM pass on x.
    """
    B, D = x.shape
    C, D2 = weight.shape
    assert D == D2 and bias.shape == (C,)
    out_dtype = x.dtype

    # W^T in MXU-native (D, C) layout; tiny, so wrapper-side cast is free.
    w_dtype = compute_dtype if compute_dtype is not None else weight.dtype
    w_t = weight.T.astype(w_dtype)                 # (D, C)
    b2d = bias.reshape(1, C).astype(jnp.float32)   # (1, C)

    xb = jnp.dtype(x.dtype).itemsize
    wb = jnp.dtype(w_dtype).itemsize
    ob = jnp.dtype(out_dtype).itemsize
    sub = _sublane(compute_dtype if compute_dtype is not None else x.dtype)

    def fast_bytes(tm_e):
        # x double-buffered, W^T resident (counted x2 conservatively),
        # out double-buffered, bias.
        return (2 * tm_e * D * xb + 2 * D * C * wb
                + 2 * tm_e * C * ob + 2 * C * 4)

    use_resident = (not force_tiled) and fast_bytes(sub) <= _VMEM_BUDGET

    if use_resident:
        # ------------------------------------------------------------------
        # Fast path: W^T fully resident, grid over M only, x streamed once.
        # ------------------------------------------------------------------
        tm_e = min(tm, _round_up(B, sub))
        # Keep >= 2 M blocks when possible so v7x's 2nd TensorCore gets work.
        if _cdiv(B, tm_e) < 2 and B >= 2 * sub:
            tm_e = _round_up(_cdiv(B, 2), sub)
        while fast_bytes(tm_e) > _VMEM_BUDGET and tm_e > sub:
            tm_e = max(sub, _round_up(tm_e // 2, sub))

        grid = (_cdiv(B, tm_e),)
        kernel = functools.partial(
            _linear_kernel_resident, compute_dtype=compute_dtype)
        return pl.pallas_call(
            kernel,
            out_shape=jax.ShapeDtypeStruct((B, C), out_dtype),
            grid_spec=pltpu.PrefetchScalarGridSpec(
                num_scalar_prefetch=0,
                grid=grid,
                in_specs=[
                    pl.BlockSpec((tm_e, D), lambda i: (i, 0)),   # x: full D
                    pl.BlockSpec((D, C), lambda i: (0, 0)),      # W^T resident
                    pl.BlockSpec((1, C), lambda i: (0, 0)),      # bias resident
                ],
                out_specs=pl.BlockSpec((tm_e, C), lambda i: (i, 0)),
            ),
            compiler_params=pltpu.CompilerParams(
                dimension_semantics=("parallel",),
                vmem_limit_bytes=_VMEM_LIMIT,
            ),
        )(x, w_t, b2d)

    # ----------------------------------------------------------------------
    # General (M, N, K)-tiled fallback: W^T too large to keep resident.
    # ----------------------------------------------------------------------
    tm_e = min(tm, _round_up(B, sub))
    if _cdiv(B, tm_e) < 2 and B >= 2 * sub:
        tm_e = _round_up(_cdiv(B, 2), sub)
    tn_e = min(tn, _round_up(C, 128))
    tk_e = min(tk, _round_up(D, 128))

    def tiled_bytes(tm_, tn_, tk_):
        return (2 * tm_ * tk_ * xb + 2 * tk_ * tn_ * wb
                + tm_ * tn_ * 4 + 2 * tm_ * tn_ * ob + 2 * tn_ * 4)

    while tiled_bytes(tm_e, tn_e, tk_e) > _VMEM_BUDGET and tm_e > sub:
        tm_e = max(sub, _round_up(tm_e // 2, sub))
    while tiled_bytes(tm_e, tn_e, tk_e) > _VMEM_BUDGET and tk_e > 128:
        tk_e = max(128, _round_up(tk_e // 2, 128))

    # Zero-pad only the reduction axis (exactness requirement) and the tiny
    # W^T / bias operands; the M remainder is handled by a cdiv grid (garbage
    # rows in the boundary block are never written back).
    Dp = _round_up(D, tk_e)
    Cp = _round_up(C, tn_e)
    if Dp != D:
        x = jnp.pad(x, ((0, 0), (0, Dp - D)))
    if (Dp, Cp) != (D, C):
        w_t = jnp.pad(w_t, ((0, Dp - D), (0, Cp - C)))
    if Cp != C:
        b2d = jnp.pad(b2d, ((0, 0), (0, Cp - C)))

    grid = (_cdiv(B, tm_e), Cp // tn_e, Dp // tk_e)
    kernel = functools.partial(_linear_kernel_tiled, compute_dtype=compute_dtype)
    out = pl.pallas_call(
        kernel,
        out_shape=jax.ShapeDtypeStruct((B, Cp), out_dtype),
        grid_spec=pltpu.PrefetchScalarGridSpec(
            num_scalar_prefetch=0,
            grid=grid,
            in_specs=[
                pl.BlockSpec((tm_e, tk_e), lambda i, j, k: (i, k)),   # x
                pl.BlockSpec((tk_e, tn_e), lambda i, j, k: (k, j)),   # W^T
                pl.BlockSpec((1, tn_e), lambda i, j, k: (0, j)),      # bias
            ],
            out_specs=pl.BlockSpec((tm_e, tn_e), lambda i, j, k: (i, j)),
            scratch_shapes=[pltpu.VMEM((tm_e, tn_e), jnp.float32)],
        ),
        compiler_params=pltpu.CompilerParams(
            dimension_semantics=("parallel", "parallel", "arbitrary"),
            vmem_limit_bytes=_VMEM_LIMIT,
        ),
    )(x, w_t, b2d)

    if Cp != C:
        out = out[:, :C]
    return out


if __name__ == "__main__":
    # --- small, deterministic example matching the module -----------------
    #   input_size = 32, class_count = 8, batch = 8
    batch, input_size, class_count = 8, 32, 8

    key = jax.random.PRNGKey(0)
    kx, kw, kb = jax.random.split(key, 3)

    x = jax.random.normal(kx, (batch, input_size), dtype=jnp.float32)
    bound = 1.0 / (input_size ** 0.5)
    weight = jax.random.uniform(
        kw, (class_count, input_size), dtype=jnp.float32,
        minval=-bound, maxval=bound)
    bias = jax.random.uniform(
        kb, (class_count,), dtype=jnp.float32, minval=-bound, maxval=bound)

    out = logistic_regression_forward(x, weight, bias)
    out = jax.block_until_ready(out)
    ref = x @ weight.T + bias
    assert out.shape == (batch, class_count)
    assert jnp.allclose(out, ref, atol=1e-5, rtol=1e-5)

    # --- larger, non-aligned shape on the resident-W fast path (f32) ------
    B2, D2_, C2 = 384, 640, 160
    kx2, kw2, kb2 = jax.random.split(jax.random.PRNGKey(1), 3)
    x2 = jax.random.normal(kx2, (B2, D2_), dtype=jnp.float32)
    w2 = jax.random.normal(kw2, (C2, D2_), dtype=jnp.float32) * 0.05
    b2 = jax.random.normal(kb2, (C2,), dtype=jnp.float32) * 0.05

    out2 = jax.block_until_ready(logistic_regression_forward(x2, w2, b2))
    ref2 = x2 @ w2.T + b2
    assert out2.shape == (B2, C2)
    assert jnp.allclose(out2, ref2, atol=3e-2, rtol=3e-2)

    # --- exercise the tiled fallback + in-kernel bf16 compute path --------
    out3 = jax.block_until_ready(
        logistic_regression_forward(
            x2, w2, b2, compute_dtype=jnp.bfloat16, force_tiled=True))
    assert out3.shape == (B2, C2)
    assert jnp.allclose(out3, ref2, atol=5e-2, rtol=5e-2)

    print("KERNEL_OK")
</pallas_src>

<mosaic_0001>
module attributes {stable_mosaic.version = 11 : i64} {
  func.func @_linear_kernel_resident(%arg0: i32, %arg1: memref<8x32xf32, #tpu.memory_space<vmem>>, %arg2: memref<32x8xf32, #tpu.memory_space<vmem>>, %arg3: memref<1x8xf32, #tpu.memory_space<vmem>>, %arg4: memref<8x8xf32, #tpu.memory_space<vmem>>) attributes {dimension_semantics = [#tpu.dimension_semantics<parallel>], iteration_bounds = array<i64: 1>, scalar_prefetch = 0 : i64, scratch_operands = 0 : i64, tpu.core_type = #tpu.core_type<tc>, window_params = [{transform_indices = @transform_0, window_bounds = array<i64: 8, 32>}, {pipeline_mode = #tpu.pipeline_mode<synchronous>, transform_indices = @transform_1, window_bounds = array<i64: 32, 8>}, {pipeline_mode = #tpu.pipeline_mode<synchronous>, transform_indices = @transform_2, window_bounds = array<i64: 1, 8>}, {transform_indices = @transform_3, window_bounds = array<i64: 8, 8>}]} {
    %c0 = arith.constant 0 : index
    %c0_0 = arith.constant 0 : index
    %0 = vector.load %arg1[%c0, %c0_0] : memref<8x32xf32, #tpu.memory_space<vmem>>, vector<8x32xf32>
    %c0_1 = arith.constant 0 : index
    %c0_2 = arith.constant 0 : index
    %1 = vector.load %arg2[%c0_1, %c0_2] : memref<32x8xf32, #tpu.memory_space<vmem>>, vector<32x8xf32>
    %cst = arith.constant dense<0.000000e+00> : vector<8x8xf32>
    %2 = tpu.matmul %0, %1, %cst {dimension_numbers = #tpu.dot_dimension_numbers<[1], [0], [0], [1], [0, 0, 1, 1], [], []>} : vector<8x32xf32>, vector<32x8xf32>, vector<8x8xf32> -> vector<8x8xf32>
    %c0_3 = arith.constant 0 : index
    %c0_4 = arith.constant 0 : index
    %3 = vector.load %arg3[%c0_3, %c0_4] : memref<1x8xf32, #tpu.memory_space<vmem>>, vector<1x8xf32>
    %4 = vector.broadcast %3 : vector<1x8xf32> to vector<8x8xf32>
    %5 = arith.addf %2, %4 : vector<8x8xf32>
    %c0_5 = arith.constant 0 : index
    %c0_6 = arith.constant 0 : index
    %6 = vector.load %arg4[%c0_5, %c0_6] : memref<8x8xf32, #tpu.memory_space<vmem>>, vector<8x8xf32>
    tpu.vector_store %arg4[%c0_5, %c0_6], %5 {strides = array<i32>} : memref<8x8xf32, #tpu.memory_space<vmem>>, vector<8x8xf32>,
    return
  }
  func.func @transform_0(%arg0: i32) -> (i32, i32) {
    %c0_i32 = arith.constant 0 : i32
    %c0_i32_0 = arith.constant 0 : i32
    return %arg0, %c0_i32 : i32, i32
  }
  func.func @transform_1(%arg0: i32) -> (i32, i32) {
    %c0_i32 = arith.constant 0 : i32
    %c0_i32_0 = arith.constant 0 : i32
    %c0_i32_1 = arith.constant 0 : i32
    return %c0_i32, %c0_i32_0 : i32, i32
  }
  func.func @transform_2(%arg0: i32) -> (i32, i32) {
    %c0_i32 = arith.constant 0 : i32
    %c0_i32_0 = arith.constant 0 : i32
    %c0_i32_1 = arith.constant 0 : i32
    return %c0_i32, %c0_i32_0 : i32, i32
  }
  func.func @transform_3(%arg0: i32) -> (i32, i32) {
    %c0_i32 = arith.constant 0 : i32
    %c0_i32_0 = arith.constant 0 : i32
    return %arg0, %c0_i32 : i32, i32
  }
}

</mosaic_0001>

<llo_original>
// kernel: logistic_regression_forward.1
$region0: #{logistic_regression_forward.1}
  #allocation0 [shape = 'u32[]', space=smem, size = 0x4, offset = 0x4, fixed_abs, tag = 'smem constant byte address 0x4 - core index']
  #allocation1 [shape = 'u32[144,128]{1,0:T(1,128)}', space=vmem, size = 0x12000, scoped, tag = 'internal scratch']
  %s0 = inlined_call_operand.vmem [shape: f32[8,32], index: 0, kind: input, shape index: {}]
  %s1 = inlined_call_operand.vmem [shape: f32[32,8], index: 1, kind: input, shape index: {}]
  %s2 = inlined_call_operand.vmem [shape: f32[1,8], index: 2, kind: input, shape index: {}]
  %s3 = inlined_call_operand.hbm [shape: f32[8,8], index: 3, kind: output, shape index: {}]
  %s4 = sld [smem:[#allocation0]]
  $region22: #{logistic_regression_forward.1} parent=0
    _
  %s6 = ssub.s32 1, %s4
  %s7 = scalar_select 0, %s6, %s4
  $region1: #{logistic_regression_forward.1} parent=0
    #allocation2 [shape = 'u8[4096]{0}', space=vmem, size = 0x1000, scoped, tag = 'output window, operand 0, single buffered']
    #allocation3 [shape = 's32[1]{0}', space=sflag, size = 0x4, scoped, tag = 'scoped memory for logistic_regression_forward.1']
    %8 = vsyncpa [#allocation3], 0
    // Predicated region
    $region2: #{logistic_regression_forward.1} parent=1 // pred_check
      _
    $region3: #{logistic_regression_forward.1} parent=1 // pred_check_branch
      %10 = sbr.rel (0) target = $region5
    $region4: #{logistic_regression_forward.1} parent=1 // pred_region
      _
    $region5: #{logistic_regression_forward.1} parent=1 // pred_fallthru
      _
    // Predicated region
    $region6: #{logistic_regression_forward.1} parent=1 // pred_check
      _
    $region7: #{logistic_regression_forward.1} parent=1 // pred_check_branch
      %12 = sbr.rel (0) target = $region9
    $region8: #{logistic_regression_forward.1} parent=1 // pred_region
      _
    $region9: #{logistic_regression_forward.1} parent=1 // pred_fallthru
      _
    // Predicated region
    $region10: #{logistic_regression_forward.1} parent=1 // pred_check
      _
    $region11: #{logistic_regression_forward.1} parent=1 // pred_check_branch
      %14 = sbr.rel (0) target = $region13
    $region12: #{logistic_regression_forward.1} parent=1 // pred_region
      _
    $region13: #{logistic_regression_forward.1} parent=1 // pred_fallthru
      _
    %v15 = vld [vmem:[%s0] sm:$0xff]
    %v16 = vld [vmem:[%s1] sm:$0xff]
    %v17 = vld [vmem:[%s1 + $0x8] sm:$0xff]
    %v18 = vld [vmem:[%s1 + $0x10] sm:$0xff]
    %v19 = vld [vmem:[%s1 + $0x18] sm:$0xff]
    %v20 = vld [vmem:[%s2] sm:$0x1]
    %v22 = vlaneseq
    %v23 = vshrl.u32 %v22, 7
    %v24 = vsub.s32 0, %v23
    %v25 = vrot.slane %v20, %v24
    %vm27 = vcmask 261120
    %v29 = vsel %vm27, %v15, 0
    %31 = vmatprep.subr.mxu0 0.0
    %32 = vmatpush1.msra.mxu0 %v16
    %33 = vmatprep.subr.mxu0 0.0
    %34 = vmatpush1.msra.mxu0 %v17
    %35 = vmatprep.subr.mxu0 0.0
    %36 = vmatpush1.msra.mxu0 %v18
    %37 = vmatprep.subr.mxu0 0.0
    %38 = vmatpush1.msra.mxu0 %v19
    %39 = vmatprep.subr.mxu0 0.0
    %40 = vmatpush1.msra.mxu0 0.0
    %41 = vmatprep.subr.mxu0 0.0
    %42 = vmatpush1.msra.mxu0 0.0
    %43 = vmatprep.subr.mxu0 0.0
    %44 = vmatpush1.msra.mxu0 0.0
    %45 = vmatprep.subr.mxu0 0.0
    %46 = vmatpush1.msra.mxu0 0.0
    %47 = vmatprep.subr.mxu0 0.0
    %48 = vmatpush1.msra.mxu0 0.0
    %49 = vmatprep.subr.mxu0 0.0
    %50 = vmatpush1.msra.mxu0 0.0
    %51 = vmatprep.subr.mxu0 0.0
    %52 = vmatpush1.msra.mxu0 0.0
    %53 = vmatprep.subr.mxu0 0.0
    %54 = vmatpush1.msra.mxu0 0.0
    %55 = vmatprep.subr.mxu0 0.0
    %56 = vmatpush1.msra.mxu0 0.0
    %57 = vmatprep.subr.mxu0 0.0
    %58 = vmatpush1.msra.mxu0 0.0
    %59 = vmatprep.subr.mxu0 0.0
    %60 = vmatpush1.msra.mxu0 0.0
    %61 = vmatprep.subr.mxu0 0.0
    %62 = vmatpush1.msra.mxu0 0.0
    %63 = vmatprep.subr.mxu0 0.0
    %64 = vmatpush1.msra.mxu0 0.0
    %65 = vmatprep.subr.mxu0 0.0
    %66 = vmatpush1.msra.mxu0 0.0
    %67 = vmatprep.subr.mxu0 0.0
    %68 = vmatpush1.msra.mxu0 0.0
    %69 = vmatprep.subr.mxu0 0.0
    %70 = vmatpush1.msra.mxu0 0.0
    %71 = vmatprep.subr.mxu0 0.0
    %72 = vmatpush1.msra.mxu0 0.0
    %73 = vmatprep.subr.mxu0 0.0
    %74 = vmatpush1.msra.mxu0 0.0
    %75 = vmatprep.subr.mxu0 0.0
    %76 = vmatpush1.msra.mxu0 0.0
    %77 = vmatprep.subr.mxu0 0.0
    %78 = vmatpush1.msra.mxu0 0.0
    %79 = vmatprep.subr.mxu0 0.0
    %80 = vmatpush1.msra.mxu0 0.0
    %81 = vmatprep.subr.mxu0 0.0
    %82 = vmatpush1.msra.mxu0 0.0
    %83 = vmatprep.subr.mxu0 0.0
    %84 = vmatpush1.msra.mxu0 0.0
    %85 = vmatprep.subr.mxu0 0.0
    %86 = vmatpush1.msra.mxu0 0.0
    %87 = vmatprep.subr.mxu0 0.0
    %88 = vmatpush1.msra.mxu0 0.0
    %89 = vmatprep.subr.mxu0 0.0
    %90 = vmatpush1.msra.mxu0 0.0
    %91 = vmatprep.subr.mxu0 0.0
    %92 = vmatpush1.msra.mxu0 0.0
    %93 = vmatprep.subr.mxu0 0.0
    %94 = vmatpush1.msra.mxu0 0.0
    %95 = vmatprep.mubr.f32.mxu0 0.0
    %96 = vmatmul.mubr.f32.gmra.mrb[0].mxu0 %v29
    %v97 = vpop.f32.mrb[0].mxu0
    %v98 = vadd.f32 %v25, %v97
    %v99 = vpop.f32.mrb[0].mxu0
    %100 = vdwg.mxu0
    %vm101 = vcmask 64512
    %102 = vst.msk [vmem:[#allocation2] sm:$0xff] %vm101, %v98
    // Predicated region
    $region14: #{logistic_regression_forward.1} parent=1 // pred_check
      _
    $region15: #{logistic_regression_forward.1} parent=1 // pred_check_branch
      %104 = sbr.rel (0) target = $region17
    $region16: #{logistic_regression_forward.1} parent=1 // pred_region
      %s106 = ssub.s32 128, 128
      %107 = vsyncadd [#allocation3], %s106
      %s109 = sshll.u32 [#allocation2], 4
      %s110 = int_to_ptr.vmem [resolvable:$true] %s109
      %112 = dma.vmem_to_hbm [thread:$0]  %s110, 128, %s3, [#allocation3]
    $region17: #{logistic_regression_forward.1} parent=1 // pred_fallthru
      _
    // Predicated region
    $region18: #{logistic_regression_forward.1} parent=1 // pred_check
      _
    $region19: #{logistic_regression_forward.1} parent=1 // pred_check_branch
      %114 = sbr.rel (0) target = $region21
    $region20: #{logistic_regression_forward.1} parent=1 // pred_region
      %115 = dma.done [#allocation3], 128
    $region21: #{logistic_regression_forward.1} parent=1 // pred_fallthru
      _
    %116 = vsyncpa [#allocation3], 1

</llo_original>
